<compile_context>
chip_gen: v6e
topology: v6e:2x2x1
jax: 0.10.0
libtpu: 0.0.40
codegen_flags: <defaults>
</compile_context>

<pallas_src>
import functools

import jax
import jax.numpy as jnp
from jax import lax
from jax.experimental import pallas as pl
from jax.experimental.pallas import tpu as pltpu


def _tag_loss_kernel(order_ref, nvalid_ref, gt_sm_ref, x1_ref, y1_ref, x2_ref, y2_ref,
                     pred_ref, gt_ref, propT_ref, out_ref, diff_scr,
                     *, tag_thr, min_height, num_props, tag_dim):
    """Per-image pull/push tag loss; writes (push, pull) into lanes 0/1 of out row 0."""
    b = pl.program_id(0)
    N = num_props
    D = tag_dim
    eps = 1e-6

    pred = pred_ref[0].astype(jnp.float32)       # (N, D)
    gt_row = gt_ref[0]                           # (1, N) int32 (lane-dense, for vector compares)
    propT = propT_ref[0].astype(jnp.float32)     # (5, N) coordinate / score rows

    x1r, y1r = propT[0:1, :], propT[1:2, :]
    x2r, y2r = propT[2:3, :], propT[3:4, :]
    sc_row = propT[4:5, :]                       # (1, N) scores of proposal j

    # ---- pairwise mean squared tag distance via Gram matrix on the MXU ----
    # diff[i,j] = (||p_i||^2 + ||p_j||^2 - 2 p_i.p_j) / D, clamped at 0 (cancellation).
    # TODO(synk): for N in the thousands, row-block-tile diff (or store it bf16) so the
    # (N,N) scratch fits v7x's 64 MiB per-core VMEM.
    gram = lax.dot_general(pred, pred, (((1,), (1,)), ((), ())),
                           preferred_element_type=jnp.float32)            # (N, N)
    pred_sq = pred * pred
    rowsq_col = jnp.sum(pred_sq, axis=1, keepdims=True)                    # (N, 1)
    rowsq_row = lax.dot_general(jnp.ones((1, D), jnp.float32), pred_sq,
                                (((1,), (1,)), ((), ())),
                                preferred_element_type=jnp.float32)        # (1, N)
    diff_scr[...] = jnp.maximum(rowsq_col + rowsq_row - 2.0 * gram, 0.0) * (1.0 / D)

    # ---- validity: assigned gt (>= 0, exactly the reference's pos_mask) and tall
    #      enough (heights = y2 - y1, no "+1", matching the reference) ----
    heights = y2r - y1r
    valid = (gt_row >= 0) & (heights > min_height)
    active0 = valid.astype(jnp.float32)                                    # (1, N)

    iota_row = lax.broadcasted_iota(jnp.int32, (1, N), 1)
    zero11 = jnp.zeros((1, 1), jnp.float32)

    def body(t, carry):
        active, tot_pull, tot_push, pull_cnt, push_cnt = carry
        # t-th candidate in descending-score order (ties -> larger original index,
        # matching ascending stable sort then pop-from-the-end in the reference).
        i_idx = order_ref[b, t]                              # int32 scalar from SMEM
        gt_i = gt_sm_ref[b, i_idx]                           # int32 scalar from SMEM
        x1_i = x1_ref[b, i_idx]                              # f32 scalars from SMEM
        y1_i = y1_ref[b, i_idx]
        x2_i = x2_ref[b, i_idx]
        y2_i = y2_ref[b, i_idx]

        onehot = iota_row == i_idx                           # (1, N)
        act_b = active > 0.5
        remaining = act_b & jnp.logical_not(onehot)

        # overlap sign only (mmdet v1.x "+1 pixel" convention): iou > 0 <=> inter > 0
        iw = jnp.maximum(jnp.minimum(x2_i, x2r) - jnp.maximum(x1_i, x1r) + 1.0, 0.0)
        ih = jnp.maximum(jnp.minimum(y2_i, y2r) - jnp.maximum(y1_i, y1r) + 1.0, 0.0)
        overlap = remaining & ((iw * ih) > 0.0)

        diff_i = diff_scr[pl.ds(i_idx, 1), :]                # (1, N) dynamic row fetch
        check = diff_i < tag_thr
        same = gt_row == gt_i
        pull_m = overlap & same & jnp.logical_not(check)
        push_m = overlap & jnp.logical_not(same) & check

        # one fused cross-lane reduction for all five per-iteration scalars
        stacked = jnp.concatenate([
            jnp.where(onehot, active, 0.0),                  # candidate still active?
            pull_m.astype(jnp.float32),                      # pull count
            jnp.where(pull_m, diff_i * sc_row, 0.0),         # pull sum
            push_m.astype(jnp.float32),                      # push count
            jnp.where(push_m, jnp.exp(-diff_i) * sc_row, 0.0),  # push sum
        ], axis=0)                                           # (5, N)
        red = jnp.sum(stacked, axis=1, keepdims=True)        # (5, 1) single XLU pass
        act_i = red[0:1, 0:1]
        pull_n = red[1:2, 0:1]
        pull_sum = red[2:3, 0:1]
        push_n = red[3:4, 0:1]
        push_sum = red[4:5, 0:1]

        do = act_i > 0.5                                     # (1,1) bool
        pull_it = jnp.where(pull_n > 0.0, pull_sum / jnp.maximum(pull_n, 1.0), 0.0)
        push_it = jnp.where(push_n > 0.0, push_sum / jnp.maximum(push_n, 1.0), 0.0)

        # drop i and every overlapping proposal whose tag diff < thr
        keep = remaining & jnp.logical_not(overlap & check)
        active_next = jnp.where(do, keep.astype(jnp.float32), active)
        tot_pull = tot_pull + jnp.where(do, pull_it, 0.0)
        tot_push = tot_push + jnp.where(do, push_it, 0.0)
        pull_cnt = pull_cnt + jnp.where(do & (pull_n > 0.0), 1.0, 0.0)
        push_cnt = push_cnt + jnp.where(do & (push_n > 0.0), 1.0, 0.0)
        return active_next, tot_pull, tot_push, pull_cnt, push_cnt

    # dynamic trip count: invalid proposals were sorted last in the wrapper, so only
    # valid candidates are visited (suppressed ones are skipped via the `do` gate).
    n_valid = nvalid_ref[b]
    init = (active0, zero11, zero11, zero11, zero11)
    _, tot_pull, tot_push, pull_cnt, push_cnt = lax.fori_loop(0, n_valid, body, init)

    # pull_cnt/push_cnt == 0  ->  0 / eps == 0, exactly like the reference.
    pull = tot_pull / (pull_cnt + eps)
    push = tot_push / (push_cnt + eps)

    lane = lax.broadcasted_iota(jnp.int32, (8, 128), 1)
    out_ref[0] = jnp.where(lane == 0, push, 0.0) + jnp.where(lane == 1, pull, 0.0)


def _round_up(x, m):
    return ((x + m - 1) // m) * m


def _vmem_limit_bytes(N, D):
    """Generation-aware VMEM budget: scratch + temporaries + double-buffered IO."""
    diff_bytes = _round_up(N, 8) * _round_up(N, 128) * 4          # (N,N) f32 scratch
    setup_tmp = 2 * diff_bytes                                    # gram + fused temps
    io_bytes = 2 * (_round_up(N, 8) * _round_up(D, 128) * 4       # pred
                    + 8 * _round_up(N, 128) * 4                   # gt row
                    + 8 * _round_up(N, 128) * 4                   # propT
                    + 8 * 128 * 4)                                # out
    need = diff_bytes + setup_tmp + io_bytes + (4 << 20)
    try:
        cap = int(getattr(pltpu.get_tpu_info(), "vmem_capacity_bytes", 64 << 20))
    except Exception:
        cap = 64 << 20                                            # v7x per-core (smallest)
    return int(min(cap - (8 << 20), max(need, 32 << 20)))


def end2end_tag_loss_pallas(pred, gt_inds, proposals, *, pull_weight=1.0,
                            push_weight=1.0, tag_thr=0.1, min_height=0.0):
    """pred: (B,N,D) f32; gt_inds: (B,N) int32 (-1 = padding); proposals: (B,N,5) f32."""
    B, N, D = pred.shape
    pred = pred.astype(jnp.float32)
    proposals = proposals.astype(jnp.float32)
    gt_inds = gt_inds.astype(jnp.int32)
    gt_row = gt_inds.reshape(B, 1, N)                          # lane-dense gt rows (VMEM)
    propT = jnp.transpose(proposals, (0, 2, 1))                # (B, 5, N) row layout

    # validity exactly as in the reference: pos_mask (gt >= 0) then the height filter.
    heights = proposals[..., 3] - proposals[..., 1]
    valid = (gt_inds >= 0) & (heights > jnp.float32(min_height))
    num_valid = jnp.sum(valid, axis=-1).astype(jnp.int32)      # (B,) dynamic trip counts

    # Descending score order with invalid proposals pushed to the back; ascending
    # stable sort then reverse => among score ties the larger original index comes
    # first (matches the reference's idx[-1] pop on an ascending stable sort).
    scores = proposals[..., 4]
    key_scores = jnp.where(valid, scores, -jnp.inf)
    order = jnp.argsort(key_scores, axis=-1, stable=True)[:, ::-1].astype(jnp.int32)

    # candidate-side box coords, scalar-prefetched into SMEM (read per greedy step)
    x1s = proposals[..., 0]
    y1s = proposals[..., 1]
    x2s = proposals[..., 2]
    y2s = proposals[..., 3]

    kernel = functools.partial(_tag_loss_kernel, tag_thr=float(tag_thr),
                               min_height=float(min_height), num_props=N, tag_dim=D)

    idx_map = lambda b, *_: (b, 0, 0)
    out = pl.pallas_call(
        kernel,
        out_shape=jax.ShapeDtypeStruct((B, 8, 128), jnp.float32),
        grid_spec=pltpu.PrefetchScalarGridSpec(
            num_scalar_prefetch=7,
            grid=(B,),
            in_specs=[
                pl.BlockSpec((1, N, D), idx_map),   # pred (tag embeddings)
                pl.BlockSpec((1, 1, N), idx_map),   # gt row (vector compares)
                pl.BlockSpec((1, 5, N), idx_map),   # proposals^T coord/score rows
            ],
            out_specs=pl.BlockSpec((1, 8, 128), idx_map),
            scratch_shapes=[pltpu.VMEM((N, N), jnp.float32)],   # tag-distance matrix only
        ),
        compiler_params=pltpu.CompilerParams(
            dimension_semantics=("parallel",),
            vmem_limit_bytes=_vmem_limit_bytes(N, D)),
    )(order, num_valid, gt_inds, x1s, y1s, x2s, y2s, pred, gt_row, propT)

    push = jnp.sum(out[:, 0, 0]) / B * push_weight
    pull = jnp.sum(out[:, 0, 1]) / B * pull_weight
    return {"push_loss": push, "pull_loss": pull}


class End2EndTagLoss:
    """JAX/Pallas counterpart of mmdet End2EndTagLoss (no learnable parameters)."""

    def __init__(self, reduction='none', loss_weight=1.0, group_anchor=False,
                 pull_weight=1, push_weight=1, tag_thr=0.1, min_height=0):
        self.reduction = reduction
        self.loss_weight = loss_weight
        self.group_anchor = group_anchor
        self.pull_weight = pull_weight
        self.push_weight = push_weight
        self.tag_thr = tag_thr
        self.min_height = min_height

    def __call__(self, pred, gt_inds, gt_bboxes, proposal_list, weight=None,
                 avg_factor=None, reduction_override=None, **kwargs):
        assert weight is None or weight == 1, 'please use pull/push_weight instead'
        # gt_bboxes is unused by single_tag_loss (matches the reference).
        return end2end_tag_loss_pallas(
            pred, gt_inds, proposal_list,
            pull_weight=self.pull_weight, push_weight=self.push_weight,
            tag_thr=self.tag_thr, min_height=self.min_height)


if __name__ == "__main__":
    key = jax.random.PRNGKey(0)
    B, N, D = 2, 16, 8   # 2 images, 16 padded proposals each, 8-dim tag embeddings

    k1, k2, k3, k4, k5 = jax.random.split(key, 5)
    pred = jax.random.normal(k1, (B, N, D), dtype=jnp.float32)

    x1 = jax.random.uniform(k2, (B, N), minval=0.0, maxval=50.0)
    y1 = jax.random.uniform(k3, (B, N), minval=0.0, maxval=50.0)
    wh = jax.random.uniform(k4, (B, N, 2), minval=5.0, maxval=40.0)
    scores = jax.random.uniform(k5, (B, N), minval=0.05, maxval=1.0)
    proposals = jnp.stack(
        [x1, y1, x1 + wh[..., 0], y1 + wh[..., 1], scores], axis=-1
    ).astype(jnp.float32)                                     # (B, N, 5)

    # gt assignments in {-1, 0, 1, 2}; -1 marks negatives / padding.
    gt_inds = jax.random.randint(jax.random.PRNGKey(42), (B, N), -1, 3).astype(jnp.int32)
    gt_inds = gt_inds.at[:, -2:].set(-1)                      # force some padding

    loss_mod = End2EndTagLoss(pull_weight=1.0, push_weight=1.0,
                              tag_thr=0.1, min_height=0)
    out = loss_mod(pred, gt_inds, None, proposals)
    push = jax.block_until_ready(out["push_loss"])
    pull = jax.block_until_ready(out["pull_loss"])

    assert jnp.isfinite(push) and jnp.isfinite(pull)
    print("KERNEL_OK")
</pallas_src>

<mosaic_0001>
module attributes {stable_mosaic.version = 11 : i64} {
  func.func @_tag_loss_kernel(%arg0: i32, %arg1: memref<2x16xi32, #tpu.memory_space<smem>>, %arg2: memref<2xi32, #tpu.memory_space<smem>>, %arg3: memref<2x16xi32, #tpu.memory_space<smem>>, %arg4: memref<2x16xf32, #tpu.memory_space<smem>>, %arg5: memref<2x16xf32, #tpu.memory_space<smem>>, %arg6: memref<2x16xf32, #tpu.memory_space<smem>>, %arg7: memref<2x16xf32, #tpu.memory_space<smem>>, %arg8: memref<1x16x8xf32, #tpu.memory_space<vmem>>, %arg9: memref<1x1x16xi32, #tpu.memory_space<vmem>>, %arg10: memref<1x5x16xf32, #tpu.memory_space<vmem>>, %arg11: memref<1x8x128xf32, #tpu.memory_space<vmem>>, %arg12: memref<16x16xf32, #tpu.memory_space<vmem>>) attributes {dimension_semantics = [#tpu.dimension_semantics<parallel>], iteration_bounds = array<i64: 2>, scalar_prefetch = 7 : i64, scratch_operands = 1 : i64, tpu.core_type = #tpu.core_type<tc>, window_params = [{transform_indices = @transform_0, window_bounds = array<i64: 1, 16, 8>}, {transform_indices = @transform_1, window_bounds = array<i64: 1, 1, 16>}, {transform_indices = @transform_2, window_bounds = array<i64: 1, 5, 16>}, {transform_indices = @transform_3, window_bounds = array<i64: 1, 8, 128>}]} {
    %c0 = arith.constant 0 : index
    %c0_0 = arith.constant 0 : index
    %c0_1 = arith.constant 0 : index
    %0 = vector.load %arg8[%c0, %c0_0, %c0_1] : memref<1x16x8xf32, #tpu.memory_space<vmem>>, vector<1x16x8xf32>
    %1 = vector.shape_cast %0 : vector<1x16x8xf32> to vector<16x8xf32>
    %c0_2 = arith.constant 0 : index
    %c0_3 = arith.constant 0 : index
    %c0_4 = arith.constant 0 : index
    %2 = vector.load %arg9[%c0_2, %c0_3, %c0_4] : memref<1x1x16xi32, #tpu.memory_space<vmem>>, vector<1x1x16xi32>
    %3 = vector.shape_cast %2 : vector<1x1x16xi32> to vector<1x16xi32>
    %c0_5 = arith.constant 0 : index
    %c0_6 = arith.constant 0 : index
    %c0_7 = arith.constant 0 : index
    %4 = vector.load %arg10[%c0_5, %c0_6, %c0_7] : memref<1x5x16xf32, #tpu.memory_space<vmem>>, vector<1x5x16xf32>
    %5 = vector.shape_cast %4 : vector<1x5x16xf32> to vector<5x16xf32>
    %6 = vector.extract_strided_slice %5 {offsets = [0, 0], sizes = [1, 16], strides = [1, 1]} : vector<5x16xf32> to vector<1x16xf32>
    %7 = vector.extract_strided_slice %5 {offsets = [1, 0], sizes = [1, 16], strides = [1, 1]} : vector<5x16xf32> to vector<1x16xf32>
    %8 = vector.extract_strided_slice %5 {offsets = [2, 0], sizes = [1, 16], strides = [1, 1]} : vector<5x16xf32> to vector<1x16xf32>
    %9 = vector.extract_strided_slice %5 {offsets = [3, 0], sizes = [1, 16], strides = [1, 1]} : vector<5x16xf32> to vector<1x16xf32>
    %10 = vector.extract_strided_slice %5 {offsets = [4, 0], sizes = [1, 16], strides = [1, 1]} : vector<5x16xf32> to vector<1x16xf32>
    %cst = arith.constant dense<0.000000e+00> : vector<16x16xf32>
    %11 = tpu.matmul %1, %1, %cst {dimension_numbers = #tpu.dot_dimension_numbers<[1], [1], [0], [0], [0, 0, 1, 0], [], []>} : vector<16x8xf32>, vector<16x8xf32>, vector<16x16xf32> -> vector<16x16xf32>
    %12 = arith.mulf %1, %1 : vector<16x8xf32>
    %cst_8 = arith.constant dense<0.000000e+00> : vector<16xf32>
    %13 = vector.multi_reduction <add>, %12, %cst_8 [1] : vector<16x8xf32> to vector<16xf32>
    %14 = vector.shape_cast %13 : vector<16xf32> to vector<16x1xf32>
    %cst_9 = arith.constant 1.000000e+00 : f32
    %15 = vector.broadcast %cst_9 : f32 to vector<1x8xf32>
    %cst_10 = arith.constant dense<0.000000e+00> : vector<1x16xf32>
    %16 = tpu.matmul %15, %12, %cst_10 {dimension_numbers = #tpu.dot_dimension_numbers<[1], [1], [0], [0], [0, 0, 1, 0], [], []>} : vector<1x8xf32>, vector<16x8xf32>, vector<1x16xf32> -> vector<1x16xf32>
    %17 = vector.broadcast %14 : vector<16x1xf32> to vector<16x16xf32>
    %18 = vector.broadcast %16 : vector<1x16xf32> to vector<16x16xf32>
    %19 = arith.addf %17, %18 : vector<16x16xf32>
    %cst_11 = arith.constant 2.000000e+00 : f32
    %20 = vector.broadcast %cst_11 : f32 to vector<16x16xf32>
    %21 = arith.mulf %20, %11 : vector<16x16xf32>
    %22 = arith.subf %19, %21 : vector<16x16xf32>
    %cst_12 = arith.constant 0.000000e+00 : f32
    %23 = vector.broadcast %cst_12 : f32 to vector<16x16xf32>
    %24 = arith.maximumf %22, %23 : vector<16x16xf32>
    %cst_13 = arith.constant 1.250000e-01 : f32
    %25 = vector.broadcast %cst_13 : f32 to vector<16x16xf32>
    %26 = arith.mulf %24, %25 : vector<16x16xf32>
    %c0_14 = arith.constant 0 : index
    %c0_15 = arith.constant 0 : index
    %27 = vector.load %arg12[%c0_14, %c0_15] : memref<16x16xf32, #tpu.memory_space<vmem>>, vector<16x16xf32>
    tpu.vector_store %arg12[%c0_14, %c0_15], %26 {strides = array<i32>} : memref<16x16xf32, #tpu.memory_space<vmem>>, vector<16x16xf32>,
    %28 = arith.subf %9, %7 : vector<1x16xf32>
    %c0_i32 = arith.constant 0 : i32
    %29 = vector.broadcast %c0_i32 : i32 to vector<1x16xi32>
    %30 = arith.cmpi sge, %3, %29 : vector<1x16xi32>
    %cst_16 = arith.constant 0.000000e+00 : f32
    %31 = vector.broadcast %cst_16 : f32 to vector<1x16xf32>
    %32 = arith.cmpf ogt, %28, %31 : vector<1x16xf32>
    %33 = arith.andi %30, %32 : vector<1x16xi1>
    %34 = arith.extui %33 : vector<1x16xi1> to vector<1x16xi32>
    %35 = arith.sitofp %34 : vector<1x16xi32> to vector<1x16xf32>
    %36 = tpu.iota {dimensions = array<i32: 1>} : vector<1x16xi32>
    %cst_17 = arith.constant 0.000000e+00 : f32
    %37 = vector.broadcast %cst_17 : f32 to vector<1x1xf32>
    %38 = arith.index_cast %arg0 : i32 to index
    %39 = memref.load %arg2[%38] : memref<2xi32, #tpu.memory_space<smem>>
    %c0_i32_18 = arith.constant 0 : i32
    %40 = arith.subi %39, %c0_i32_18 : i32
    %41 = arith.addi %c0_i32_18, %40 : i32
    %c1_i32 = arith.constant 1 : i32
    %42:5 = scf.for %arg13 = %c0_i32_18 to %41 step %c1_i32 iter_args(%arg14 = %35, %arg15 = %37, %arg16 = %37, %arg17 = %37, %arg18 = %37) -> (vector<1x16xf32>, vector<1x1xf32>, vector<1x1xf32>, vector<1x1xf32>, vector<1x1xf32>)  : i32 {
      %66 = arith.index_cast %arg0 : i32 to index
      %67 = arith.index_cast %arg13 : i32 to index
      %68 = memref.load %arg1[%66, %67] : memref<2x16xi32, #tpu.memory_space<smem>>
      %69 = arith.index_cast %arg0 : i32 to index
      %70 = arith.index_cast %68 : i32 to index
      %71 = memref.load %arg3[%69, %70] : memref<2x16xi32, #tpu.memory_space<smem>>
      %72 = arith.index_cast %arg0 : i32 to index
      %73 = arith.index_cast %68 : i32 to index
      %74 = memref.load %arg4[%72, %73] : memref<2x16xf32, #tpu.memory_space<smem>>
      %75 = arith.index_cast %arg0 : i32 to index
      %76 = arith.index_cast %68 : i32 to index
      %77 = memref.load %arg5[%75, %76] : memref<2x16xf32, #tpu.memory_space<smem>>
      %78 = arith.index_cast %arg0 : i32 to index
      %79 = arith.index_cast %68 : i32 to index
      %80 = memref.load %arg6[%78, %79] : memref<2x16xf32, #tpu.memory_space<smem>>
      %81 = arith.index_cast %arg0 : i32 to index
      %82 = arith.index_cast %68 : i32 to index
      %83 = memref.load %arg7[%81, %82] : memref<2x16xf32, #tpu.memory_space<smem>>
      %84 = vector.broadcast %68 : i32 to vector<1x16xi32>
      %85 = arith.cmpi eq, %36, %84 : vector<1x16xi32>
      %cst_28 = arith.constant 5.000000e-01 : f32
      %86 = vector.broadcast %cst_28 : f32 to vector<1x16xf32>
      %87 = arith.cmpf ogt, %arg14, %86 : vector<1x16xf32>
      %cst_29 = arith.constant dense<true> : vector<1x16xi1>
      %88 = arith.xori %85, %cst_29 : vector<1x16xi1>
      %89 = arith.andi %87, %88 : vector<1x16xi1>
      %90 = vector.broadcast %80 : f32 to vector<1x16xf32>
      %91 = arith.minimumf %90, %8 : vector<1x16xf32>
      %92 = vector.broadcast %74 : f32 to vector<1x16xf32>
      %93 = arith.maximumf %92, %6 : vector<1x16xf32>
      %94 = arith.subf %91, %93 : vector<1x16xf32>
      %cst_30 = arith.constant 1.000000e+00 : f32
      %95 = vector.broadcast %cst_30 : f32 to vector<1x16xf32>
      %96 = arith.addf %94, %95 : vector<1x16xf32>
      %cst_31 = arith.constant 0.000000e+00 : f32
      %97 = vector.broadcast %cst_31 : f32 to vector<1x16xf32>
      %98 = arith.maximumf %96, %97 : vector<1x16xf32>
      %99 = vector.broadcast %83 : f32 to vector<1x16xf32>
      %100 = arith.minimumf %99, %9 : vector<1x16xf32>
      %101 = vector.broadcast %77 : f32 to vector<1x16xf32>
      %102 = arith.maximumf %101, %7 : vector<1x16xf32>
      %103 = arith.subf %100, %102 : vector<1x16xf32>
      %cst_32 = arith.constant 1.000000e+00 : f32
      %104 = vector.broadcast %cst_32 : f32 to vector<1x16xf32>
      %105 = arith.addf %103, %104 : vector<1x16xf32>
      %cst_33 = arith.constant 0.000000e+00 : f32
      %106 = vector.broadcast %cst_33 : f32 to vector<1x16xf32>
      %107 = arith.maximumf %105, %106 : vector<1x16xf32>
      %108 = arith.mulf %98, %107 : vector<1x16xf32>
      %cst_34 = arith.constant 0.000000e+00 : f32
      %109 = vector.broadcast %cst_34 : f32 to vector<1x16xf32>
      %110 = arith.cmpf ogt, %108, %109 : vector<1x16xf32>
      %111 = arith.andi %89, %110 : vector<1x16xi1>
      %112 = arith.index_cast %68 : i32 to index
      %c0_35 = arith.constant 0 : index
      %113 = vector.load %arg12[%112, %c0_35] : memref<16x16xf32, #tpu.memory_space<vmem>>, vector<1x16xf32>
      %cst_36 = arith.constant 1.000000e-01 : f32
      %114 = vector.broadcast %cst_36 : f32 to vector<1x16xf32>
      %115 = arith.cmpf olt, %113, %114 : vector<1x16xf32>
      %116 = vector.broadcast %71 : i32 to vector<1x16xi32>
      %117 = arith.cmpi eq, %3, %116 : vector<1x16xi32>
      %118 = arith.andi %111, %117 : vector<1x16xi1>
      %cst_37 = arith.constant dense<true> : vector<1x16xi1>
      %119 = arith.xori %115, %cst_37 : vector<1x16xi1>
      %120 = arith.andi %118, %119 : vector<1x16xi1>
      %cst_38 = arith.constant dense<true> : vector<1x16xi1>
      %121 = arith.xori %117, %cst_38 : vector<1x16xi1>
      %122 = arith.andi %111, %121 : vector<1x16xi1>
      %123 = arith.andi %122, %115 : vector<1x16xi1>
      %cst_39 = arith.constant 0.000000e+00 : f32
      %124 = vector.broadcast %cst_39 : f32 to vector<1x16xf32>
      %125 = arith.select %85, %arg14, %124 : vector<1x16xi1>, vector<1x16xf32>
      %126 = arith.extui %120 : vector<1x16xi1> to vector<1x16xi32>
      %127 = arith.sitofp %126 : vector<1x16xi32> to vector<1x16xf32>
      %128 = arith.mulf %113, %10 : vector<1x16xf32>
      %cst_40 = arith.constant 0.000000e+00 : f32
      %129 = vector.broadcast %cst_40 : f32 to vector<1x16xf32>
      %130 = arith.select %120, %128, %129 : vector<1x16xi1>, vector<1x16xf32>
      %131 = arith.extui %123 : vector<1x16xi1> to vector<1x16xi32>
      %132 = arith.sitofp %131 : vector<1x16xi32> to vector<1x16xf32>
      %cst_41 = arith.constant 0.000000e+00 : f32
      %133 = vector.broadcast %cst_41 : f32 to vector<1x16xf32>
      %134 = arith.subf %133, %113 : vector<1x16xf32>
      %135 = math.exp %134 : vector<1x16xf32>
      %136 = arith.mulf %135, %10 : vector<1x16xf32>
      %cst_42 = arith.constant 0.000000e+00 : f32
      %137 = vector.broadcast %cst_42 : f32 to vector<1x16xf32>
      %138 = arith.select %123, %136, %137 : vector<1x16xi1>, vector<1x16xf32>
      %139 = tpu.concatenate %125, %127, %130, %132, %138 in 0 : vector<1x16xf32>, vector<1x16xf32>, vector<1x16xf32>, vector<1x16xf32>, vector<1x16xf32> -> vector<5x16xf32>
      %cst_43 = arith.constant dense<0.000000e+00> : vector<5xf32>
      %140 = vector.multi_reduction <add>, %139, %cst_43 [1] : vector<5x16xf32> to vector<5xf32>
      %141 = vector.shape_cast %140 : vector<5xf32> to vector<5x1xf32>
      %142 = vector.extract_strided_slice %141 {offsets = [0, 0], sizes = [1, 1], strides = [1, 1]} : vector<5x1xf32> to vector<1x1xf32>
      %143 = vector.extract_strided_slice %141 {offsets = [1, 0], sizes = [1, 1], strides = [1, 1]} : vector<5x1xf32> to vector<1x1xf32>
      %144 = vector.extract_strided_slice %141 {offsets = [2, 0], sizes = [1, 1], strides = [1, 1]} : vector<5x1xf32> to vector<1x1xf32>
      %145 = vector.extract_strided_slice %141 {offsets = [3, 0], sizes = [1, 1], strides = [1, 1]} : vector<5x1xf32> to vector<1x1xf32>
      %146 = vector.extract_strided_slice %141 {offsets = [4, 0], sizes = [1, 1], strides = [1, 1]} : vector<5x1xf32> to vector<1x1xf32>
      %cst_44 = arith.constant 5.000000e-01 : f32
      %147 = vector.broadcast %cst_44 : f32 to vector<1x1xf32>
      %148 = arith.cmpf ogt, %142, %147 : vector<1x1xf32>
      %cst_45 = arith.constant 0.000000e+00 : f32
      %149 = vector.broadcast %cst_45 : f32 to vector<1x1xf32>
      %150 = arith.cmpf ogt, %143, %149 : vector<1x1xf32>
      %cst_46 = arith.constant 1.000000e+00 : f32
      %151 = vector.broadcast %cst_46 : f32 to vector<1x1xf32>
      %152 = arith.maximumf %143, %151 : vector<1x1xf32>
      %153 = arith.divf %144, %152 : vector<1x1xf32>
      %cst_47 = arith.constant 0.000000e+00 : f32
      %154 = vector.broadcast %cst_47 : f32 to vector<1x1xf32>
      %155 = arith.select %150, %153, %154 : vector<1x1xi1>, vector<1x1xf32>
      %cst_48 = arith.constant 0.000000e+00 : f32
      %156 = vector.broadcast %cst_48 : f32 to vector<1x1xf32>
      %157 = arith.cmpf ogt, %145, %156 : vector<1x1xf32>
      %cst_49 = arith.constant 1.000000e+00 : f32
      %158 = vector.broadcast %cst_49 : f32 to vector<1x1xf32>
      %159 = arith.maximumf %145, %158 : vector<1x1xf32>
      %160 = arith.divf %146, %159 : vector<1x1xf32>
      %cst_50 = arith.constant 0.000000e+00 : f32
      %161 = vector.broadcast %cst_50 : f32 to vector<1x1xf32>
      %162 = arith.select %157, %160, %161 : vector<1x1xi1>, vector<1x1xf32>
      %163 = arith.andi %111, %115 : vector<1x16xi1>
      %cst_51 = arith.constant dense<true> : vector<1x16xi1>
      %164 = arith.xori %163, %cst_51 : vector<1x16xi1>
      %165 = arith.andi %89, %164 : vector<1x16xi1>
      %166 = arith.extui %165 : vector<1x16xi1> to vector<1x16xi32>
      %167 = arith.sitofp %166 : vector<1x16xi32> to vector<1x16xf32>
      %168 = vector.shape_cast %148 : vector<1x1xi1> to vector<1x1xi1>
      %169 = vector.broadcast %168 : vector<1x1xi1> to vector<1x16xi1>
      %170 = arith.select %169, %167, %arg14 : vector<1x16xi1>, vector<1x16xf32>
      %cst_52 = arith.constant 0.000000e+00 : f32
      %171 = vector.broadcast %cst_52 : f32 to vector<1x1xf32>
      %172 = arith.select %148, %155, %171 : vector<1x1xi1>, vector<1x1xf32>
      %173 = arith.addf %arg15, %172 : vector<1x1xf32>
      %cst_53 = arith.constant 0.000000e+00 : f32
      %174 = vector.broadcast %cst_53 : f32 to vector<1x1xf32>
      %175 = arith.select %148, %162, %174 : vector<1x1xi1>, vector<1x1xf32>
      %176 = arith.addf %arg16, %175 : vector<1x1xf32>
      %cst_54 = arith.constant 0.000000e+00 : f32
      %177 = vector.broadcast %cst_54 : f32 to vector<1x1xf32>
      %178 = arith.cmpf ogt, %143, %177 : vector<1x1xf32>
      %179 = arith.andi %148, %178 : vector<1x1xi1>
      %cst_55 = arith.constant 1.000000e+00 : f32
      %cst_56 = arith.constant 0.000000e+00 : f32
      %180 = vector.broadcast %cst_55 : f32 to vector<1x1xf32>
      %181 = vector.broadcast %cst_56 : f32 to vector<1x1xf32>
      %182 = arith.select %179, %180, %181 : vector<1x1xi1>, vector<1x1xf32>
      %183 = arith.addf %arg17, %182 : vector<1x1xf32>
      %cst_57 = arith.constant 0.000000e+00 : f32
      %184 = vector.broadcast %cst_57 : f32 to vector<1x1xf32>
      %185 = arith.cmpf ogt, %145, %184 : vector<1x1xf32>
      %186 = arith.andi %148, %185 : vector<1x1xi1>
      %cst_58 = arith.constant 1.000000e+00 : f32
      %cst_59 = arith.constant 0.000000e+00 : f32
      %187 = vector.broadcast %cst_58 : f32 to vector<1x1xf32>
      %188 = vector.broadcast %cst_59 : f32 to vector<1x1xf32>
      %189 = arith.select %186, %187, %188 : vector<1x1xi1>, vector<1x1xf32>
      %190 = arith.addf %arg18, %189 : vector<1x1xf32>
      scf.yield %170, %173, %176, %183, %190 : vector<1x16xf32>, vector<1x1xf32>, vector<1x1xf32>, vector<1x1xf32>, vector<1x1xf32>
    }
    %cst_19 = arith.constant 9.99999997E-7 : f32
    %43 = vector.broadcast %cst_19 : f32 to vector<1x1xf32>
    %44 = arith.addf %42#3, %43 : vector<1x1xf32>
    %45 = arith.divf %42#1, %44 : vector<1x1xf32>
    %cst_20 = arith.constant 9.99999997E-7 : f32
    %46 = vector.broadcast %cst_20 : f32 to vector<1x1xf32>
    %47 = arith.addf %42#4, %46 : vector<1x1xf32>
    %48 = arith.divf %42#2, %47 : vector<1x1xf32>
    %49 = tpu.iota {dimensions = array<i32: 1>} : vector<8x128xi32>
    %c0_i32_21 = arith.constant 0 : i32
    %50 = vector.broadcast %c0_i32_21 : i32 to vector<8x128xi32>
    %51 = arith.cmpi eq, %49, %50 : vector<8x128xi32>
    %cst_22 = arith.constant 0.000000e+00 : f32
    %52 = vector.shape_cast %48 : vector<1x1xf32> to vector<1x1xf32>
    %53 = vector.broadcast %52 : vector<1x1xf32> to vector<8x128xf32>
    %54 = vector.broadcast %cst_22 : f32 to vector<8x128xf32>
    %55 = arith.select %51, %53, %54 : vector<8x128xi1>, vector<8x128xf32>
    %c1_i32_23 = arith.constant 1 : i32
    %56 = vector.broadcast %c1_i32_23 : i32 to vector<8x128xi32>
    %57 = arith.cmpi eq, %49, %56 : vector<8x128xi32>
    %cst_24 = arith.constant 0.000000e+00 : f32
    %58 = vector.shape_cast %45 : vector<1x1xf32> to vector<1x1xf32>
    %59 = vector.broadcast %58 : vector<1x1xf32> to vector<8x128xf32>
    %60 = vector.broadcast %cst_24 : f32 to vector<8x128xf32>
    %61 = arith.select %57, %59, %60 : vector<8x128xi1>, vector<8x128xf32>
    %62 = arith.addf %55, %61 : vector<8x128xf32>
    %c0_25 = arith.constant 0 : index
    %c0_26 = arith.constant 0 : index
    %c0_27 = arith.constant 0 : index
    %63 = vector.load %arg11[%c0_25, %c0_26, %c0_27] : memref<1x8x128xf32, #tpu.memory_space<vmem>>, vector<1x8x128xf32>
    %64 = vector.shape_cast %63 : vector<1x8x128xf32> to vector<8x128xf32>
    %65 = vector.shape_cast %62 : vector<8x128xf32> to vector<1x8x128xf32>
    tpu.vector_store %arg11[%c0_25, %c0_26, %c0_27], %65 {strides = array<i32>} : memref<1x8x128xf32, #tpu.memory_space<vmem>>, vector<1x8x128xf32>,
    return
  }
  func.func @transform_0(%arg0: i32, %arg1: memref<2x16xi32, #tpu.memory_space<smem>>, %arg2: memref<2xi32, #tpu.memory_space<smem>>, %arg3: memref<2x16xi32, #tpu.memory_space<smem>>, %arg4: memref<2x16xf32, #tpu.memory_space<smem>>, %arg5: memref<2x16xf32, #tpu.memory_space<smem>>, %arg6: memref<2x16xf32, #tpu.memory_space<smem>>, %arg7: memref<2x16xf32, #tpu.memory_space<smem>>) -> (i32, i32, i32) {
    %c0_i32 = arith.constant 0 : i32
    %c0_i32_0 = arith.constant 0 : i32
    %c0_i32_1 = arith.constant 0 : i32
    return %arg0, %c0_i32, %c0_i32_0 : i32, i32, i32
  }
  func.func @transform_1(%arg0: i32, %arg1: memref<2x16xi32, #tpu.memory_space<smem>>, %arg2: memref<2xi32, #tpu.memory_space<smem>>, %arg3: memref<2x16xi32, #tpu.memory_space<smem>>, %arg4: memref<2x16xf32, #tpu.memory_space<smem>>, %arg5: memref<2x16xf32, #tpu.memory_space<smem>>, %arg6: memref<2x16xf32, #tpu.memory_space<smem>>, %arg7: memref<2x16xf32, #tpu.memory_space<smem>>) -> (i32, i32, i32) {
    %c0_i32 = arith.constant 0 : i32
    %c0_i32_0 = arith.constant 0 : i32
    %c0_i32_1 = arith.constant 0 : i32
    return %arg0, %c0_i32, %c0_i32_0 : i32, i32, i32
  }
  func.func @transform_2(%arg0: i32, %arg1: memref<2x16xi32, #tpu.memory_space<smem>>, %arg2: memref<2xi32, #tpu.memory_space<smem>>, %arg3: memref<2x16xi32, #tpu.memory_space<smem>>, %arg4: memref<2x16xf32, #tpu.memory_space<smem>>, %arg5: memref<2x16xf32, #tpu.memory_space<smem>>, %arg6: memref<2x16xf32, #tpu.memory_space<smem>>, %arg7: memref<2x16xf32, #tpu.memory_space<smem>>) -> (i32, i32, i32) {
    %c0_i32 = arith.constant 0 : i32
    %c0_i32_0 = arith.constant 0 : i32
    %c0_i32_1 = arith.constant 0 : i32
    return %arg0, %c0_i32, %c0_i32_0 : i32, i32, i32
  }
  func.func @transform_3(%arg0: i32, %arg1: memref<2x16xi32, #tpu.memory_space<smem>>, %arg2: memref<2xi32, #tpu.memory_space<smem>>, %arg3: memref<2x16xi32, #tpu.memory_space<smem>>, %arg4: memref<2x16xf32, #tpu.memory_space<smem>>, %arg5: memref<2x16xf32, #tpu.memory_space<smem>>, %arg6: memref<2x16xf32, #tpu.memory_space<smem>>, %arg7: memref<2x16xf32, #tpu.memory_space<smem>>) -> (i32, i32, i32) {
    %c0_i32 = arith.constant 0 : i32
    %c0_i32_0 = arith.constant 0 : i32
    %c0_i32_1 = arith.constant 0 : i32
    return %arg0, %c0_i32, %c0_i32_0 : i32, i32, i32
  }
}

</mosaic_0001>

<llo_original>
// kernel: tpu_custom_call.1
$region0: #{tpu_custom_call.1}
  #allocation0 [shape = 'u32[]', space=smem, size = 0x4, offset = 0x4, fixed_abs, tag = 'smem constant byte address 0x4 - core index']
  #allocation1 [shape = 'u32[144,128]{1,0:T(1,128)}', space=vmem, size = 0x12000, scoped, tag = 'internal scratch']
  #allocation2 [shape = 'f32[16,16]{1,0:T(8,128)}', space=vmem, size = 0x2000, scoped, tag = 'scratch operand']
  #allocation3 [shape = 's32[1]{0}', space=sflag, size = 0x4, scoped, tag = 'scoped memory for tpu_custom_call.1']
  #allocation4 [shape = 'u8[1024]{0}', space=smem, size = 0x400, scoped, tag = 'prefetched SMEM operand 0']
  #allocation5 [shape = 'u8[512]{0}', space=smem, size = 0x200, scoped, tag = 'prefetched SMEM operand 1']
  #allocation6 [shape = 'u8[1024]{0}', space=smem, size = 0x400, scoped, tag = 'prefetched SMEM operand 2']
  #allocation7 [shape = 'u8[1024]{0}', space=smem, size = 0x400, scoped, tag = 'prefetched SMEM operand 3']
  #allocation8 [shape = 'u8[1024]{0}', space=smem, size = 0x400, scoped, tag = 'prefetched SMEM operand 4']
  #allocation9 [shape = 'u8[1024]{0}', space=smem, size = 0x400, scoped, tag = 'prefetched SMEM operand 5']
  #allocation10 [shape = 'u8[1024]{0}', space=smem, size = 0x400, scoped, tag = 'prefetched SMEM operand 6']
  %s0 = inlined_call_operand.vmem [shape: s32[2,16], index: 0, kind: input, shape index: {}]
  %s1 = inlined_call_operand.vmem [shape: s32[2], index: 1, kind: input, shape index: {}]
  %s2 = inlined_call_operand.vmem [shape: s32[2,16], index: 2, kind: input, shape index: {}]
  %s3 = inlined_call_operand.vmem [shape: f32[2,16], index: 3, kind: input, shape index: {}]
  %s4 = inlined_call_operand.vmem [shape: f32[2,16], index: 4, kind: input, shape index: {}]
  %s5 = inlined_call_operand.vmem [shape: f32[2,16], index: 5, kind: input, shape index: {}]
  %s6 = inlined_call_operand.vmem [shape: f32[2,16], index: 6, kind: input, shape index: {}]
  %s7 = inlined_call_operand.vmem [shape: f32[2,16,8], index: 7, kind: input, shape index: {}]
  %s8 = inlined_call_operand.vmem [shape: s32[2,1,16], index: 8, kind: input, shape index: {}]
  %s9 = inlined_call_operand.vmem [shape: f32[2,5,16], index: 9, kind: input, shape index: {}]
  %s10 = inlined_call_operand.hbm [shape: f32[2,8,128], index: 10, kind: output, shape index: {}]
  %s11 = sld [smem:[#allocation0]]
  $region52: #{tpu_custom_call.1} parent=0
    _
  %s13 = ssub.s32 1, %s11
  %s14 = scalar_select 0, %s13, %s11
  %s15 = sshll.u32 %s0, 4
  %s16 = int_to_ptr.vmem [resolvable:$true] %s15
  %18 = dma.vmem_to_smem %s16, 32, [#allocation4], [#allocation3]
  %s19 = sshll.u32 %s1, 4
  %s20 = int_to_ptr.vmem [resolvable:$true] %s19
  %22 = dma.vmem_to_smem %s20, 16, [#allocation5], [#allocation3]
  %s23 = sshll.u32 %s2, 4
  %s24 = int_to_ptr.vmem [resolvable:$true] %s23
  %26 = dma.vmem_to_smem %s24, 32, [#allocation6], [#allocation3]
  %s27 = sshll.u32 %s3, 4
  %s28 = int_to_ptr.vmem [resolvable:$true] %s27
  %30 = dma.vmem_to_smem %s28, 32, [#allocation7], [#allocation3]
  %s31 = sshll.u32 %s4, 4
  %s32 = int_to_ptr.vmem [resolvable:$true] %s31
  %34 = dma.vmem_to_smem %s32, 32, [#allocation8], [#allocation3]
  %s35 = sshll.u32 %s5, 4
  %s36 = int_to_ptr.vmem [resolvable:$true] %s35
  %38 = dma.vmem_to_smem %s36, 32, [#allocation9], [#allocation3]
  %s39 = sshll.u32 %s6, 4
  %s40 = int_to_ptr.vmem [resolvable:$true] %s39
  %42 = dma.vmem_to_smem %s40, 32, [#allocation10], [#allocation3]
  %43 = dma.done [#allocation3], 208
  %44 = sfence
  $region1: #{tpu_custom_call.1} parent=0
    #allocation11 [shape = 'u8[8192]{0}', space=vmem, size = 0x2000, scoped, tag = 'output window, operand 0']
    #allocation12 [shape = 's32[2]{0}', space=sflag, size = 0x8, scoped, tag = 'scoped memory for tpu_custom_call.1']
    %45 = vsyncpa [#allocation12], 0
    %s46 = scalar_lea.sflag [#allocation12], 1
    %47 = vsyncpa %s46, 0
    loop: start=0, step=1, limit=4
    $region2: #{tpu_custom_call.1} parent=1 // loop_pre_header
      _
    $region3: #{tpu_custom_call.1} parent=1 // loop_header
      %s49 = sphi 0, %s53
      %p50 = scmp.ge.s32.totalorder %s49, 4
      %s59 = sphi 0, %s61
      %s62 = sphi 0, %s59
      %s63 = sphi 0, %s62
      %s79 = sphi 0, %s63
      %s85 = sphi 0, %s87
      %s88 = sphi 0, %s85
      %s89 = sphi 0, %s88
      %s105 = sphi 0, %s89
      %s111 = sphi 0, %s113
      %s114 = sphi 0, %s111
      %s115 = sphi 0, %s114
      %s131 = sphi 0, %s115
      %s137 = sphi 0, %s139
      %s140 = sphi 0, %s137
      %s141 = sphi 0, %s140
      %s157 = sphi 0, %s141
    $region4: #{tpu_custom_call.1} parent=1 // loop_header_branch
      %52 = sbr.rel (%p50) target = $region8
    $region5: #{tpu_custom_call.1} parent=1 // loop_body
      %s54 = ssub.s32 %s49, 1
      %s55 = ssub.s32 %s49, 2
      %s56 = sadd.s32 %s49, 1
      %s57 = ssub.s32 %s49, %s56
      %p58 = scmp.eq.s32.totalorder %s57, 0
      %s60 = sadd.s32 %s59, 1
      %s61 = scalar_select %p58, %s59, %s60
      %p64 = pneg %p58
      %p65 = scmp.eq.s32.totalorder %s49, 1
      %p66 = por %p64, %p65
      %p67 = scmp.ne.s32.totalorder %s59, %s62
      %p68 = scmp.eq.s32.totalorder %s49, 0
      %p69 = por %p67, %p68
      %p70 = scmp.ne.s32.totalorder %s59, %s62
      %p71 = scmp.eq.s32.totalorder %s54, 1
      %p72 = por %p70, %p71
      %p73 = scmp.ne.s32.totalorder %s62, %s63
      %p74 = scmp.eq.s32.totalorder %s54, 0
      %p75 = por %p73, %p74
      %p76 = scmp.ne.s32.totalorder %s62, %s63
      %p77 = scmp.eq.s32.totalorder %s55, 1
      %p78 = por %p76, %p77
      %p80 = scmp.ne.s32.totalorder %s63, %s79
      %p81 = scmp.eq.s32.totalorder %s55, 0
      %p82 = por %p80, %p81
      %s83 = ssub.s32 %s49, %s56
      %p84 = scmp.eq.s32.totalorder %s83, 0
      %s86 = sadd.s32 %s85, 1
      %s87 = scalar_select %p84, %s85, %s86
      %p90 = pneg %p84
      %p91 = scmp.eq.s32.totalorder %s49, 1
      %p92 = por %p90, %p91
      %p93 = scmp.ne.s32.totalorder %s85, %s88
      %p94 = scmp.eq.s32.totalorder %s49, 0
      %p95 = por %p93, %p94
      %p96 = scmp.ne.s32.totalorder %s85, %s88
      %p97 = scmp.eq.s32.totalorder %s54, 1
      %p98 = por %p96, %p97
      %p99 = scmp.ne.s32.totalorder %s88, %s89
      %p100 = scmp.eq.s32.totalorder %s54, 0
      %p101 = por %p99, %p100
      %p102 = scmp.ne.s32.totalorder %s88, %s89
      %p103 = scmp.eq.s32.totalorder %s55, 1
      %p104 = por %p102, %p103
      %p106 = scmp.ne.s32.totalorder %s89, %s105
      %p107 = scmp.eq.s32.totalorder %s55, 0
      %p108 = por %p106, %p107
      %s109 = ssub.s32 %s49, %s56
      %p110 = scmp.eq.s32.totalorder %s109, 0
      %s112 = sadd.s32 %s111, 1
      %s113 = scalar_select %p110, %s111, %s112
      %p116 = pneg %p110
      %p117 = scmp.eq.s32.totalorder %s49, 1
      %p118 = por %p116, %p117
      %p119 = scmp.ne.s32.totalorder %s111, %s114
      %p120 = scmp.eq.s32.totalorder %s49, 0
      %p121 = por %p119, %p120
      %p122 = scmp.ne.s32.totalorder %s111, %s114
      %p123 = scmp.eq.s32.totalorder %s54, 1
      %p124 = por %p122, %p123
      %p125 = scmp.ne.s32.totalorder %s114, %s115
      %p126 = scmp.eq.s32.totalorder %s54, 0
      %p127 = por %p125, %p126
      %p128 = scmp.ne.s32.totalorder %s114, %s115
      %p129 = scmp.eq.s32.totalorder %s55, 1
      %p130 = por %p128, %p129
      %p132 = scmp.ne.s32.totalorder %s115, %s131
      %p133 = scmp.eq.s32.totalorder %s55, 0
      %p134 = por %p132, %p133
      %s135 = ssub.s32 %s49, %s56
      %p136 = scmp.eq.s32.totalorder %s135, 0
      %s138 = sadd.s32 %s137, 1
      %s139 = scalar_select %p136, %s137, %s138
      %p142 = pneg %p136
      %p143 = scmp.eq.s32.totalorder %s49, 1
      %p144 = por %p142, %p143
      %p145 = scmp.ne.s32.totalorder %s137, %s140
      %p146 = scmp.eq.s32.totalorder %s49, 0
      %p147 = por %p145, %p146
      %p148 = scmp.ne.s32.totalorder %s137, %s140
      %p149 = scmp.eq.s32.totalorder %s54, 1
      %p150 = por %p148, %p149
      %p151 = scmp.ne.s32.totalorder %s140, %s141
      %p152 = scmp.eq.s32.totalorder %s54, 0
      %p153 = por %p151, %p152
      %p154 = scmp.ne.s32.totalorder %s140, %s141
      %p155 = scmp.eq.s32.totalorder %s55, 1
      %p156 = por %p154, %p155
      %p158 = scmp.ne.s32.totalorder %s141, %s157
      %p159 = scmp.eq.s32.totalorder %s55, 0
      %p160 = por %p158, %p159
      %p161 = scmp.le.s32.totalorder 1, %s49
      %p162 = scmp.lt.s32.totalorder %s49, 3
      %p163 = pnand %p161, %p162
      %p164 = pneg %p163
      // Predicated region
      $region9: #{tpu_custom_call.1} parent=5 // pred_check
        _
      $region10: #{tpu_custom_call.1} parent=5 // pred_check_branch
        %166 = sbr.rel (%p163) target = $region12
      $region11: #{tpu_custom_call.1} parent=5 // pred_region
        %s167 = ssub.s32 %s49, 1
      $region12: #{tpu_custom_call.1} parent=5 // pred_fallthru
        _
      %p168 = scmp.lt.s32.totalorder %s49, 2
      // Predicated region
      $region13: #{tpu_custom_call.1} parent=5 // pred_check
        %p169 = pneg %p168
      $region14: #{tpu_custom_call.1} parent=5 // pred_check_branch
        %171 = sbr.rel (%p169) target = $region16
      $region15: #{tpu_custom_call.1} parent=5 // pred_region
        // Predicated region
        $region17: #{tpu_custom_call.1} parent=15 // pred_check
          %p172 = pneg %p69
        $region18: #{tpu_custom_call.1} parent=15 // pred_check_branch
          %174 = sbr.rel (%p172) target = $region20
        $region19: #{tpu_custom_call.1} parent=15 // pred_region
          %p175 = scmp.lt.s32.totalorder %s49, 1
          %s176 = scalar_select %p175, %s49, 1
          %s177 = smul.addr %s176, 2
          %s178 = smul.addr %s177, 8
          %s179 = scalar_lea.vmem %s7, %s178
        $region20: #{tpu_custom_call.1} parent=15 // pred_fallthru
          _
        // Predicated region
        $region21: #{tpu_custom_call.1} parent=15 // pred_check
          %p180 = pneg %p95
        $region22: #{tpu_custom_call.1} parent=15 // pred_check_branch
          %182 = sbr.rel (%p180) target = $region24
        $region23: #{tpu_custom_call.1} parent=15 // pred_region
          %p183 = scmp.lt.s32.totalorder %s49, 1
          %s184 = scalar_select %p183, %s49, 1
          %s185 = scalar_lea.vmem %s8, %s184
        $region24: #{tpu_custom_call.1} parent=15 // pred_fallthru
          _
        // Predicated region
        $region25: #{tpu_custom_call.1} parent=15 // pred_check
          %p186 = pneg %p121
        $region26: #{tpu_custom_call.1} parent=15 // pred_check_branch
          %188 = sbr.rel (%p186) target = $region28
        $region27: #{tpu_custom_call.1} parent=15 // pred_region
          %p189 = scmp.lt.s32.totalorder %s49, 1
          %s190 = scalar_select %p189, %s49, 1
          %s191 = smul.addr %s190, 8
          %s192 = scalar_lea.vmem %s9, %s191
        $region28: #{tpu_custom_call.1} parent=15 // pred_fallthru
          _
      $region16: #{tpu_custom_call.1} parent=5 // pred_fallthru
        _
      %p193 = scmp.le.s32.totalorder 1, %s49
      %p194 = scmp.lt.s32.totalorder %s49, 3
      %p195 = pnand %p193, %p194
      %p196 = pneg %p195
      // Predicated region
      $region29: #{tpu_custom_call.1} parent=5 // pred_check
        _
      $region30: #{tpu_custom_call.1} parent=5 // pred_check_branch
        %198 = sbr.rel (%p195) target = $region32
      $region31: #{tpu_custom_call.1} parent=5 // pred_region
        %s199 = ssub.s32 %s49, 1
        %p200 = scmp.lt.s32.totalorder %s54, 1
        %s201 = scalar_select %p200, %s54, 1
        %s202 = smul.addr %s201, 2
        %s203 = smul.addr %s202, 8
        %s204 = scalar_lea.vmem %s7, %s203
        %p205 = pneg %p75
        %p206 = pneg %p72
        %p207 = scmp.lt.s32.totalorder %s54, 1
        %s208 = scalar_select %p207, %s54, 1
        %s209 = scalar_lea.vmem %s8, %s208
        %p210 = pneg %p101
        %p211 = pneg %p98
        %p212 = scmp.lt.s32.totalorder %s54, 1
        %s213 = scalar_select %p212, %s54, 1
        %s214 = smul.addr %s213, 8
        %s215 = scalar_lea.vmem %s9, %s214
        %p216 = pneg %p127
        %p217 = pneg %p124
        %p218 = pneg %p153
        %p219 = pneg %p150
        %s220 = sand.u32 %s140, 1
        %s221 = scalar_lea.sflag [#allocation12], %s220
        %s222 = sand.u32 %s140, 1
        %s223 = smul.addr %s222, 8
        %s224 = scalar_lea.vmem [#allocation11], %s223
        %p225 = scmp.lt.s32.totalorder %s54, 1
        %s226 = scalar_select %p225, %s54, 1
        %s227 = smul.addr %s226, 2
        %s228 = smul.addr %s227, 8
        %s229 = scalar_lea.vmem %s7, %s228
        %p230 = scmp.lt.s32.totalorder %s54, 1
        %s231 = scalar_select %p230, %s54, 1
        %s232 = scalar_lea.vmem %s8, %s231
        %p233 = scmp.lt.s32.totalorder %s54, 1
        %s234 = scalar_select %p233, %s54, 1
        %s235 = smul.addr %s234, 8
        %s236 = scalar_lea.vmem %s9, %s235
        %v237 = vld [vmem:[%s229] sm:$0xff]
        %v238 = vld [vmem:[%s229 + $0x8] sm:$0xff]
        %v239 = vld [vmem:[%s232] sm:$0x1]
        %v240 = vld [vmem:[%s236] sm:$0x1f]
        %vm241 = vcmask 64512
        %v243 = vsel %vm241, %v237, 0
        %v246 = vsel %vm241, %v238, 0
        %248 = vmatprep.subr.mxu0 0.0
        %249 = vmatpush1.xpose.msra.mxu0 0.0
        %250 = vmatprep.subr.mxu0 0.0
        %251 = vmatpush1.xpose.msra.mxu0 0.0
        %252 = vmatprep.subr.mxu0 0.0
        %253 = vmatpush1.xpose.msra.mxu0 0.0
        %254 = vmatprep.subr.mxu0 0.0
        %255 = vmatpush1.xpose.msra.mxu0 0.0
        %256 = vmatprep.subr.mxu0 0.0
        %257 = vmatpush1.xpose.msra.mxu0 0.0
        %258 = vmatprep.subr.mxu0 0.0
        %259 = vmatpush1.xpose.msra.mxu0 0.0
        %260 = vmatprep.subr.mxu0 0.0
        %261 = vmatpush1.xpose.msra.mxu0 0.0
        %262 = vmatprep.subr.mxu0 0.0
        %263 = vmatpush1.xpose.msra.mxu0 0.0
        %264 = vmatprep.subr.mxu0 0.0
        %265 = vmatpush1.xpose.msra.mxu0 0.0
        %266 = vmatprep.subr.mxu0 0.0
        %267 = vmatpush1.xpose.msra.mxu0 0.0
        %268 = vmatprep.subr.mxu0 0.0
        %269 = vmatpush1.xpose.msra.mxu0 0.0
        %270 = vmatprep.subr.mxu0 0.0
        %271 = vmatpush1.xpose.msra.mxu0 0.0
        %272 = vmatprep.subr.mxu0 0.0
        %273 = vmatpush1.xpose.msra.mxu0 0.0
        %274 = vmatprep.subr.mxu0 0.0
        %275 = vmatpush1.xpose.msra.mxu0 0.0
        %276 = vmatprep.subr.mxu0 0.0
        %277 = vmatpush1.xpose.msra.mxu0 %v246
        %278 = vmatprep.subr.mxu0 0.0
        %279 = vmatpush1.xpose.msra.mxu0 %v243
        %280 = vmatprep.subr.mxu0 0.0
        %281 = vmatpush2.xpose.msra.mxu0 0.0
        %282 = vmatprep.subr.mxu0 0.0
        %283 = vmatpush2.xpose.msra.mxu0 0.0
        %284 = vmatprep.subr.mxu0 0.0
        %285 = vmatpush2.xpose.msra.mxu0 0.0
        %286 = vmatprep.subr.mxu0 0.0
        %287 = vmatpush2.xpose.msra.mxu0 0.0
        %288 = vmatprep.subr.mxu0 0.0
        %289 = vmatpush2.xpose.msra.mxu0 0.0
        %290 = vmatprep.subr.mxu0 0.0
        %291 = vmatpush2.xpose.msra.mxu0 0.0
        %292 = vmatprep.subr.mxu0 0.0
        %293 = vmatpush2.xpose.msra.mxu0 0.0
        %294 = vmatprep.subr.mxu0 0.0
        %295 = vmatpush2.xpose.msra.mxu0 0.0
        %296 = vmatprep.subr.mxu0 0.0
        %297 = vmatpush2.xpose.msra.mxu0 0.0
        %298 = vmatprep.subr.mxu0 0.0
        %299 = vmatpush2.xpose.msra.mxu0 0.0
        %300 = vmatprep.subr.mxu0 0.0
        %301 = vmatpush2.xpose.msra.mxu0 0.0
        %302 = vmatprep.subr.mxu0 0.0
        %303 = vmatpush2.xpose.msra.mxu0 0.0
        %304 = vmatprep.subr.mxu0 0.0
        %305 = vmatpush2.xpose.msra.mxu0 0.0
        %306 = vmatprep.subr.mxu0 0.0
        %307 = vmatpush2.xpose.msra.mxu0 0.0
        %308 = vmatprep.subr.mxu0 0.0
        %309 = vmatpush2.xpose.msra.mxu0 0.0
        %310 = vmatprep.subr.mxu0 0.0
        %311 = vmatpush2.xpose.msra.mxu0 0.0
        %312 = vmatprep.mubr.f32.mxu0 0.0
        %313 = vmatmul.mubr.f32.gmra.mxu0 %v243
        %v314 = vpop.f32.mrf.mxu0
        %v315 = vadd.f32 0.0, %v314
        %v316 = vpop.f32.mrf.mxu0
        %317 = vmatprep.mubr.f32.mxu0 0.0
        %318 = vmatmul.mubr.f32.gmra.mxu0 %v246
        %v319 = vpop.f32.mrf.mxu0
        %v320 = vadd.f32 0.0, %v319
        %v321 = vpop.f32.mrf.mxu0
        %322 = vdwg.mxu0
        %v323 = vmul.f32 %v237, %v237
        %v324 = vmul.f32 %v238, %v238
        %v325 = vsel %vm241, %v323, 0.0
        %326 = vadd.xlane.f32.xlu0 %v325
        %v327 = vpop.xlane.xlu0 %326
        %v328 = vsel %vm241, %v324, 0.0
        %329 = vadd.xlane.f32.xlu0 %v328
        %v330 = vpop.xlane.xlu0 %329
        %v332 = vsel %vm241, 1.0, 0
        %v335 = vsel %vm241, %v323, 0
        %v338 = vsel %vm241, %v324, 0
        %340 = vmatprep.subr.mxu0 0.0
        %341 = vmatpush1.xpose.msra.mxu0 0.0
        %342 = vmatprep.subr.mxu0 0.0
        %343 = vmatpush1.xpose.msra.mxu0 0.0
        %344 = vmatprep.subr.mxu0 0.0
        %345 = vmatpush1.xpose.msra.mxu0 0.0
        %346 = vmatprep.subr.mxu0 0.0
        %347 = vmatpush1.xpose.msra.mxu0 0.0
        %348 = vmatprep.subr.mxu0 0.0
        %349 = vmatpush1.xpose.msra.mxu0 0.0
        %350 = vmatprep.subr.mxu0 0.0
        %351 = vmatpush1.xpose.msra.mxu0 0.0
        %352 = vmatprep.subr.mxu0 0.0
        %353 = vmatpush1.xpose.msra.mxu0 0.0
        %354 = vmatprep.subr.mxu0 0.0
        %355 = vmatpush1.xpose.msra.mxu0 0.0
        %356 = vmatprep.subr.mxu0 0.0
        %357 = vmatpush1.xpose.msra.mxu0 0.0
        %358 = vmatprep.subr.mxu0 0.0
        %359 = vmatpush1.xpose.msra.mxu0 0.0
        %360 = vmatprep.subr.mxu0 0.0
        %361 = vmatpush1.xpose.msra.mxu0 0.0
        %362 = vmatprep.subr.mxu0 0.0
        %363 = vmatpush1.xpose.msra.mxu0 0.0
        %364 = vmatprep.subr.mxu0 0.0
        %365 = vmatpush1.xpose.msra.mxu0 0.0
        %366 = vmatprep.subr.mxu0 0.0
        %367 = vmatpush1.xpose.msra.mxu0 0.0
        %368 = vmatprep.subr.mxu0 0.0
        %369 = vmatpush1.xpose.msra.mxu0 %v338
        %370 = vmatprep.subr.mxu0 0.0
        %371 = vmatpush1.xpose.msra.mxu0 %v335
        %372 = vmatprep.subr.mxu0 0.0
        %373 = vmatpush2.xpose.msra.mxu0 0.0
        %374 = vmatprep.subr.mxu0 0.0
        %375 = vmatpush2.xpose.msra.mxu0 0.0
        %376 = vmatprep.subr.mxu0 0.0
        %377 = vmatpush2.xpose.msra.mxu0 0.0
        %378 = vmatprep.subr.mxu0 0.0
        %379 = vmatpush2.xpose.msra.mxu0 0.0
        %380 = vmatprep.subr.mxu0 0.0
        %381 = vmatpush2.xpose.msra.mxu0 0.0
        %382 = vmatprep.subr.mxu0 0.0
        %383 = vmatpush2.xpose.msra.mxu0 0.0
        %384 = vmatprep.subr.mxu0 0.0
        %385 = vmatpush2.xpose.msra.mxu0 0.0
        %386 = vmatprep.subr.mxu0 0.0
        %387 = vmatpush2.xpose.msra.mxu0 0.0
        %388 = vmatprep.subr.mxu0 0.0
        %389 = vmatpush2.xpose.msra.mxu0 0.0
        %390 = vmatprep.subr.mxu0 0.0
        %391 = vmatpush2.xpose.msra.mxu0 0.0
        %392 = vmatprep.subr.mxu0 0.0
        %393 = vmatpush2.xpose.msra.mxu0 0.0
        %394 = vmatprep.subr.mxu0 0.0
        %395 = vmatpush2.xpose.msra.mxu0 0.0
        %396 = vmatprep.subr.mxu0 0.0
        %397 = vmatpush2.xpose.msra.mxu0 0.0
        %398 = vmatprep.subr.mxu0 0.0
        %399 = vmatpush2.xpose.msra.mxu0 0.0
        %400 = vmatprep.subr.mxu0 0.0
        %401 = vmatpush2.xpose.msra.mxu0 0.0
        %402 = vmatprep.subr.mxu0 0.0
        %403 = vmatpush2.xpose.msra.mxu0 0.0
        %404 = vmatprep.mubr.f32.mxu0 0.0
        %405 = vmatmul.mubr.f32.gmra.mxu0 %v332
        %v406 = vpop.f32.mrf.mxu0
        %v407 = vadd.f32 0.0, %v406
        %v408 = vpop.f32.mrf.mxu0
        %409 = vdwg.mxu0
        %v410 = vlaneseq
        %v411 = vshrl.u32 %v410, 7
        %v412 = vsub.s32 0, %v411
        %v413 = vrot.slane %v407, %v412
        %v414 = vadd.f32 %v327, %v413
        %v415 = vadd.f32 %v330, %v413
        %v416 = vmul.f32 %v315, 2.0
        %v417 = vmul.f32 %v320, 2.0
        %v418 = vsub.f32 %v414, %v416
        %v419 = vsub.f32 %v415, %v417
        %v420 = vmax.f32 %v418, 0.0
        %v421 = vmax.f32 %v419, 0.0
        %v422 = vmul.f32 %v420, 0.125
        %v423 = vmul.f32 %v421, 0.125
        %vm424 = vcmask 130048
        %425 = vst.msk [vmem:[#allocation2] sm:$0xff] %vm424, %v422
        %426 = vst.msk [vmem:[#allocation2 + $0x8] sm:$0xff] %vm424, %v423
        %v428 = vrot.slane %v240, 6
        %v430 = vsub.f32 %v240, %v428
        %vm431 = vcmp.ge.s32.totalorder %v239, 0
        %vm432 = vcmp.gt.f32.partialorder %v430, 0.0
        %v433 = vsel %vm432, 1, 0
        %v435 = vunpack.c.l.s4 1966171168
        %v436 = vunpack.c.0.s8 %v435
        %v437 = vlaneseq
        %v438 = vshrl.u32 %v437, 7
        %v439 = vsub.s32 %v436, %v438
        %v440 = vrot.slane %v433, %v439
        %v441 = vcombine.high %v440, %v440
        %v443 = vunpack.c.l.s4 1966171168
        %v444 = vunpack.c.0.s8 %v443
        %v445 = vlaneseq
        %v446 = vshrl.u32 %v445, 7
        %v447 = vsub.s32 %v444, %v446
        %v448 = vrot.slane %v441, %v447
        %v449 = vcombine.high %v448, %v448
        %vm450 = vcmp.ne.s32.totalorder %v449, 0
        %vm451 = vmand %vm431, %vm450
        %v452 = vsel %vm451, 1, 0
        %v453 = vcvt.s32.f32 %v452
        %v454 = vlaneseq
        %v455 = vand.u32 %v454, 127
        %s456 = sld [smem:[#allocation5 + %s54]]
        // While loop
        $region33: #{tpu_custom_call.1} parent=31 // loop_pre_header
          _
        $region34: #{tpu_custom_call.1} parent=31 // loop_header
          %s458 = sphi 0, %s460
          %p459 = scmp.ge.s32.totalorder %s458, %s456
          %v463 = vphi %v453, %v590
          %v464 = vphi 0.0, %v595
          %v465 = vphi 0.0, %v599
          %v466 = vphi 0.0, %v605
          %v467 = vphi 0.0, %v610
        $region35: #{tpu_custom_call.1} parent=31 // loop_header_branch
          %462 = sbr.rel (%p459) target = $region39
        $region36: #{tpu_custom_call.1} parent=31 // loop_body
          %s468 = sshra.s32 %s458, 7
          %s469 = sand.u32 %s458, 127
          %s470 = sadd.s32 %s468, %s54
          %s471 = smul.u32 %s470, 128
          %s472 = sshra.s32 %s458, 7
          %s473 = sand.u32 %s458, 127
          %s474 = sadd.s32 %s471, %s473
          %s475 = sld [smem:[#allocation4 + %s474]]
          %s476 = sshra.s32 %s475, 7
          %s477 = sand.u32 %s475, 127
          %s478 = sadd.s32 %s476, %s54
          %s479 = smul.u32 %s478, 128
          %s480 = sshra.s32 %s475, 7
          %s481 = sand.u32 %s475, 127
          %s482 = sadd.s32 %s479, %s481
          %s483 = sld [smem:[#allocation6 + %s482]]
          %s484 = sld [smem:[#allocation7 + %s482]]
          %s485 = sld [smem:[#allocation8 + %s482]]
          %s486 = sld [smem:[#allocation9 + %s482]]
          %s487 = sld [smem:[#allocation10 + %s482]]
          %v488 = vstv %s475
          %vm489 = vcmp.eq.s32.totalorder %v455, %v488
          %vm490 = vcmp.gt.f32.partialorder %v463, 0.5
          %vm491 = vmxor %vm489, 1
          %vm492 = vmand %vm490, %vm491
          %v493 = vstv %s486
          %v494 = vmin.f32 %v493, %v240
          %v495 = vstv %s484
          %v496 = vmax.f32 %v495, %v240
          %v498 = vrot.slane %v496, 6
          %v500 = vsub.f32 %v494, %v498
          %v501 = vadd.f32 %v500, 1.0
          %v502 = vmax.f32 %v501, 0.0
          %v503 = vstv %s487
          %v504 = vmin.f32 %v503, %v240
          %v505 = vstv %s485
          %v506 = vmax.f32 %v505, %v240
          %v508 = vrot.slane %v506, 6
          %v510 = vsub.f32 %v504, %v508
          %v511 = vadd.f32 %v510, 1.0
          %v512 = vmax.f32 %v511, 0.0
          %v514 = vrot.slane %v512, 1
          %v516 = vmul.f32 %v502, %v514
          %vm517 = vcmp.gt.f32.partialorder %v516, 0.0
          %v518 = vsel %vm517, 1, 0
          %v519 = vrot.slane %v518, 2
          %vm520 = vcmp.ne.s32.totalorder %v519, 0
          %vm521 = vmand %vm492, %vm520
          %s522 = scalar_lea.vmem [#allocation2], %s475
          %v523 = vld [vmem:[%s522] sm:$0x1]
          %vm524 = vcmp.lt.f32.partialorder %v523, 0.1
          %v525 = vstv %s483
          %vm526 = vcmp.eq.s32.totalorder %v239, %v525
          %vm527 = vmand %vm521, %vm526
          %vm528 = vmxor %vm524, 1
          %vm529 = vmand %vm527, %vm528
          %vm530 = vmxor %vm526, 1
          %vm531 = vmand %vm521, %vm530
          %vm532 = vmand %vm531, %vm524
          %v533 = vsel %vm489, %v463, 0.0
          %v534 = vsel %vm529, 1, 0
          %v535 = vcvt.s32.f32 %v534
          %v536 = vrot.slane %v240, 4
          %v538 = vmul.f32 %v523, %v536
          %v539 = vsel %vm529, %v538, 0.0
          %v540 = vsel %vm532, 1, 0
          %v541 = vcvt.s32.f32 %v540
          %v542 = vsub.f32 0.0, %v523
          %v543 = vmul.f32 %v542, 1.442695
          %v544 = vpow.pop %v543
          %v545 = vmul.f32 %v544, %v536
          %v546 = vsel %vm532, %v545, 0.0
          %v548 = vrot.slane %v535, 7
          %v551 = vrot.slane %v539, 6
          %v554 = vrot.slane %v541, 5
          %v557 = vrot.slane %v546, 4
          %vm559 = vcmask 1040384
          %v560 = vsel %vm559, %v533, %v548
          %vm561 = vcmask 1041408
          %v562 = vsel %vm561, %v560, %v551
          %vm563 = vcmask 1042432
          %v564 = vsel %vm563, %v562, %v554
          %vm565 = vcmask 1043456
          %v566 = vsel %vm565, %v564, %v557
          %vm567 = vcmask 126976
          %v568 = vsel %vm567, %v566, 0.0
          %569 = vadd.xlane.f32.xlu0 %v568
          %v570 = vpop.xlane.xlu0 %569
          %vm571 = vcmp.gt.f32.partialorder %v570, 0.5
          %vm572 = vcmp.gt.f32.partialorder %v570, 0.0
          %v573 = vmax.f32 %v570, 1.0
          %v575 = vrot.slane %v573, 7
          %v577 = vrcp.pop %v575
          %v578 = vmul.f32 %v570, %v577
          %v580 = vrot.slane %v578, 1
          %v582 = vsel %vm572, %v580, 0.0
          %vm583 = vmand %vm521, %vm524
          %vm584 = vmxor %vm583, 1
          %vm585 = vmand %vm492, %vm584
          %v586 = vsel %vm585, 1, 0
          %v587 = vcvt.s32.f32 %v586
          %v588 = vsel %vm571, 1, 0
          %vm589 = vcmp.eq.s32.totalorder %v588, 1
          %v590 = vsel %vm589, %v587, %v463
          %v592 = vrot.slane %v582, 1
          %v594 = vsel %vm571, %v592, 0.0
          %v595 = vadd.f32 %v464, %v594
          %v596 = vrot.slane %v582, 3
          %v598 = vsel %vm571, %v596, 0.0
          %v599 = vadd.f32 %v465, %v598
          %v600 = vsel %vm572, 1, 0
          %v601 = vrot.slane %v600, 1
          %vm602 = vcmp.ne.s32.totalorder %v601, 0
          %vm603 = vmand %vm571, %vm602
          %v604 = vsel %vm603, 1.0, 0.0
          %v605 = vadd.f32 %v466, %v604
          %v606 = vrot.slane %v600, 3
          %vm607 = vcmp.ne.s32.totalorder %v606, 0
          %vm608 = vmand %vm571, %vm607
          %v609 = vsel %vm608, 1.0, 0.0
          %v610 = vadd.f32 %v467, %v609
        $region37: #{tpu_custom_call.1} parent=31 // loop_footer
          %s460 = sadd.s32 %s458, 1
        $region38: #{tpu_custom_call.1} parent=31 // loop_footer_branch
          %457 = sbr.rel target = $region34
        $region39: #{tpu_custom_call.1} parent=31 // loop_exit
          _
        %v611 = vadd.f32 %v466, 1e-06
        %v612 = vrcp.pop %v611
        %v613 = vmul.f32 %v464, %v612
        %v614 = vadd.f32 %v467, 1e-06
        %v615 = vrcp.pop %v614
        %v616 = vmul.f32 %v465, %v615
        %vm617 = vcmp.eq.s32.totalorder %v455, 0
        %s619 = vtos %v616
        %v620 = vstv %s619
        %v622 = vsel %vm617, %v620, 0.0
        %vm623 = vcmp.eq.s32.totalorder %v455, 1
        %s625 = vtos %v613
        %v626 = vstv %s625
        %v628 = vsel %vm623, %v626, 0.0
        %v629 = vadd.f32 %v622, %v628
        %630 = vst [vmem:[%s224] sm:$0xff] %v629
        %s631 = sand.u32 %s140, 1
        %s632 = scalar_lea.sflag [#allocation12], %s631
        %s633 = sand.u32 %s140, 1
        %s634 = smul.addr %s633, 8
        %s635 = scalar_lea.vmem [#allocation11], %s634
        // Predicated region
        $region40: #{tpu_custom_call.1} parent=31 // pred_check
          %p636 = pneg %p150
        $region41: #{tpu_custom_call.1} parent=31 // pred_check_branch
          %638 = sbr.rel (%p636) target = $region43
        $region42: #{tpu_custom_call.1} parent=31 // pred_region
          %s640 = ssub.s32 128, 128
          %641 = vsyncadd %s632, %s640
          %s642 = smul.addr %s54, 128
          %s643 = scalar_lea.hbm %s10, %s642
          %s645 = sshll.u32 %s635, 4
          %s646 = int_to_ptr.vmem [resolvable:$true] %s645
          %648 = dma.vmem_to_hbm [thread:$0]  %s646, 128, %s643, %s632
        $region43: #{tpu_custom_call.1} parent=31 // pred_fallthru
          _
      $region32: #{tpu_custom_call.1} parent=5 // pred_fallthru
        _
      %p649 = scmp.le.s32.totalorder 2, %s49
      // Predicated region
      $region44: #{tpu_custom_call.1} parent=5 // pred_check
        %p650 = pneg %p649
      $region45: #{tpu_custom_call.1} parent=5 // pred_check_branch
        %652 = sbr.rel (%p650) target = $region47
      $region46: #{tpu_custom_call.1} parent=5 // pred_region
        %s653 = ssub.s32 %s49, 2
        // Predicated region
        $region48: #{tpu_custom_call.1} parent=46 // pred_check
          %p654 = pneg %p156
        $region49: #{tpu_custom_call.1} parent=46 // pred_check_branch
          %656 = sbr.rel (%p654) target = $region51
        $region50: #{tpu_custom_call.1} parent=46 // pred_region
          %s657 = sand.u32 %s141, 1
          %s658 = scalar_lea.sflag [#allocation12], %s657
          %s659 = sand.u32 %s141, 1
          %s660 = smul.addr %s659, 8
          %s661 = scalar_lea.vmem [#allocation11], %s660
          %662 = dma.done %s658, 128
        $region51: #{tpu_custom_call.1} parent=46 // pred_fallthru
          _
      $region47: #{tpu_custom_call.1} parent=5 // pred_fallthru
        _
    $region6: #{tpu_custom_call.1} parent=1 // loop_footer
      %s53 = sadd.s32 1, %s49
    $region7: #{tpu_custom_call.1} parent=1 // loop_footer_branch
      %48 = sbr.rel target = $region3
    $region8: #{tpu_custom_call.1} parent=1 // loop_exit
      _
    %663 = vsyncpa [#allocation12], 1
    %s664 = scalar_lea.sflag [#allocation12], 1
    %665 = vsyncpa %s664, 1

</llo_original>
